<compile_context>
chip_gen: v7x
topology: tpu7x:2x2x1
jax: 0.10.0
libtpu: 0.0.40
codegen_flags: <defaults>
</compile_context>

<pallas_src>
import numpy as np
import jax
import jax.numpy as jnp
from jax import lax
from jax.experimental import pallas as pl
from jax.experimental.pallas import tpu as pltpu


# ----------------------------- kernels ---------------------------------------

def _qconv_gemm_kernel(scale_ref, patches_ref, wq_ref, b_ref, out_ref):
    """Single-shot GEMM tile: full-K patches block @ VMEM-resident weight."""
    acc = jnp.dot(patches_ref[...], wq_ref[...], preferred_element_type=jnp.float32)
    out_ref[...] = (acc * scale_ref[0] + b_ref[...]).astype(out_ref.dtype)


def _qconv_gemm_ktiled_kernel(scale_ref, patches_ref, wq_ref, b_ref, out_ref, acc_ref):
    """Fallback for very large K: streamed weight K-slabs + f32 accumulator."""
    k = pl.program_id(1)

    @pl.when(k == 0)
    def _():
        acc_ref[...] = jnp.zeros_like(acc_ref)

    acc_ref[...] += jnp.dot(
        patches_ref[...], wq_ref[...], preferred_element_type=jnp.float32
    )

    @pl.when(k == pl.num_programs(1) - 1)
    def _():
        out_ref[...] = (acc_ref[...] * scale_ref[0] + b_ref[...]).astype(out_ref.dtype)


# ----------------------------- helpers ----------------------------------------

def _round_up(a, b):
    return ((a + b - 1) // b) * b


def _cdiv(a, b):
    return (a + b - 1) // b


def _vmem_budget_bytes():
    """Generation-aware VMEM cap: 0.7 * physical capacity (headroom for the
    compiler's internal scratch).  Falls back to v7x's 64 MiB if unknown."""
    cap = 64 * (1 << 20)
    try:
        info = pltpu.get_tpu_info()
        cap = int(getattr(info, "vmem_capacity_bytes", cap))
    except Exception:
        pass
    return int(0.7 * cap)


# ----------------------------- forward ----------------------------------------

def conv2d_quantization_forward(
    x, weight, bias=None, *,
    stride=(1, 1), padding=(0, 0), dilation=(1, 1),
    groups=1, weight_bits=8, signed=True,
):
    """Weight-only fake-quantized conv2d (training-mode scale) via im2col GEMM."""
    N, C, H, W = x.shape
    Cout, Cin, KH, KW = weight.shape
    # TODO(synk): groups != 1 (grouped conv) not implemented.
    assert groups == 1 and Cin == C, "groups != 1 not supported"
    sh, sw = stride
    ph, pw = padding
    dh, dw = dilation
    OH = (H + 2 * ph - dh * (KH - 1) - 1) // sh + 1
    OW = (W + 2 * pw - dw * (KW - 1) - 1) // sw + 1

    if signed:
        qmin, qmax = -(2 ** (weight_bits - 1)), 2 ** (weight_bits - 1) - 1
    else:
        qmin, qmax = 0, 2 ** weight_bits - 1

    K = C * KH * KW
    M = N * OH * OW

    # ---- weight fake-quantization, hoisted out of the kernel -----------------
    # training-mode scale (update_scale): max(|w|) / qmax, guarded against 0.
    scale = jnp.maximum(
        jnp.max(jnp.abs(weight)).astype(jnp.float32) / jnp.float32(qmax),
        jnp.float32(1e-12),
    )
    w_mat = weight.reshape(Cout, K).astype(jnp.float32)
    w_int = jnp.clip(jnp.round(w_mat / scale), float(qmin), float(qmax)).T  # (K, Cout)
    # bf16 stores integers exactly only up to 256; fall back to f32 beyond that
    # so wide bit-widths are not silently double-quantized.
    w_store_dtype = jnp.bfloat16 if max(abs(qmin), abs(qmax)) <= 256 else jnp.float32

    # ---- im2col (glue): bf16 + pad + NHWC first, patches built in final
    #      (M, K) layout with K order (c, kh, kw) matching OIHW flattening. ----
    # NOTE: activations feed the MXU in bf16 (explicit accuracy contract).
    xb = x.astype(jnp.bfloat16)
    xb = jnp.pad(xb, ((0, 0), (0, 0), (ph, ph), (pw, pw)))
    xb = xb.transpose(0, 2, 3, 1)  # NHWC, bf16
    cols = []
    for kh in range(KH):
        for kw in range(KW):
            h0, w0 = kh * dh, kw * dw
            cols.append(
                xb[:, h0:h0 + sh * (OH - 1) + 1:sh, w0:w0 + sw * (OW - 1) + 1:sw, :]
            )
    patches = jnp.stack(cols, axis=-1).reshape(M, K)  # (N,OH,OW,C,KH*KW) -> (M, K)

    # ---- padding / tiling -----------------------------------------------------
    out_dtype = x.dtype
    out_isz = jnp.dtype(out_dtype).itemsize
    w_isz = jnp.dtype(w_store_dtype).itemsize
    Kp = _round_up(K, 128)
    Np = 128 if Cout <= 128 else _round_up(Cout, 256)
    M16 = _round_up(max(M, 16), 16)          # bf16 minimum sublane tile is 16
    budget = _vmem_budget_bytes()

    weight_bytes = 2 * Kp * Np * w_isz       # conservatively count double-buffer
    bias_bytes = 2 * Np * 4
    singlek_fixed = weight_bytes + bias_bytes
    singlek_per_row = 2 * Kp * 2 + 2 * Np * out_isz  # patches (bf16) + out tiles

    def pick_tiles(fixed, per_row, tm_max=2048):
        room = budget - fixed
        if room <= 0:
            return None
        cap = (room // per_row) // 16 * 16
        cap = min(cap, tm_max)
        if cap < 16:
            return None
        num_m = _cdiv(M16, cap)
        if M16 >= 32:
            num_m = max(num_m, 2)            # keep both v7x TensorCores busy
        tm = _round_up(_cdiv(M16, num_m), 16)
        num_m = _cdiv(M16, tm)
        return tm, num_m

    scale_arr = scale.reshape(1)
    if bias is None:
        bias = jnp.zeros((Cout,), jnp.float32)
    b_p = jnp.pad(bias.astype(jnp.float32), (0, Np - Cout)).reshape(1, Np)
    w_p = jnp.pad(w_int, ((0, Kp - K), (0, Np - Cout))).astype(w_store_dtype)

    cost = pl.CostEstimate(
        flops=2 * M * K * Cout,
        transcendentals=0,
        bytes_accessed=M * K * 2 + K * Cout * w_isz + M * Cout * out_isz + Cout * 4,
    )

    tiles = pick_tiles(singlek_fixed, singlek_per_row)
    if tiles is not None:
        # --- preferred path: K collapsed, weight fully VMEM-resident ----------
        tm, num_m = tiles
        Mp = num_m * tm
        patches_p = jnp.pad(patches, ((0, Mp - M), (0, Kp - K)))
        est = singlek_fixed + tm * singlek_per_row
        vmem_limit = int(min(max(est + (4 << 20), 16 << 20), budget))
        out = pl.pallas_call(
            _qconv_gemm_kernel,
            out_shape=jax.ShapeDtypeStruct((Mp, Np), out_dtype),
            grid=(num_m,),
            in_specs=[
                pl.BlockSpec(memory_space=pltpu.MemorySpace.SMEM),   # scale (1,)
                pl.BlockSpec((tm, Kp), lambda i: (i, 0)),            # patches tile
                pl.BlockSpec((Kp, Np), lambda i: (0, 0)),            # resident weight
                pl.BlockSpec((1, Np), lambda i: (0, 0)),             # bias row
            ],
            out_specs=pl.BlockSpec((tm, Np), lambda i: (i, 0)),
            compiler_params=pltpu.CompilerParams(
                dimension_semantics=("parallel",),
                vmem_limit_bytes=vmem_limit,
            ),
            cost_estimate=cost,
        )(scale_arr, patches_p, w_p, b_p)
    else:
        # --- fallback (huge K): K-tiled GEMM with streamed weight slabs -------
        tk = 128
        for cand in (1024, 512, 384, 256, 128):
            if Kp % cand == 0 and 2 * cand * Np * w_isz <= budget // 2:
                tk = cand
                break
        kt_fixed = 2 * tk * Np * w_isz + bias_bytes
        kt_per_row = 2 * tk * 2 + 2 * Np * out_isz + Np * 4   # + f32 accumulator
        kt_tiles = pick_tiles(kt_fixed, kt_per_row, tm_max=1024)
        assert kt_tiles is not None, "conv too large for VMEM budget"
        tm, num_m = kt_tiles
        Mp = num_m * tm
        patches_p = jnp.pad(patches, ((0, Mp - M), (0, Kp - K)))
        est = kt_fixed + tm * kt_per_row
        vmem_limit = int(min(max(est + (4 << 20), 16 << 20), budget))
        out = pl.pallas_call(
            _qconv_gemm_ktiled_kernel,
            out_shape=jax.ShapeDtypeStruct((Mp, Np), out_dtype),
            grid=(num_m, Kp // tk),
            in_specs=[
                pl.BlockSpec(memory_space=pltpu.MemorySpace.SMEM),   # scale (1,)
                pl.BlockSpec((tm, tk), lambda i, k: (i, k)),         # patches tile
                pl.BlockSpec((tk, Np), lambda i, k: (k, 0)),         # weight K-slab
                pl.BlockSpec((1, Np), lambda i, k: (0, 0)),          # bias row
            ],
            out_specs=pl.BlockSpec((tm, Np), lambda i, k: (i, 0)),
            scratch_shapes=[pltpu.VMEM((tm, Np), jnp.float32)],
            compiler_params=pltpu.CompilerParams(
                dimension_semantics=("parallel", "arbitrary"),
                vmem_limit_bytes=vmem_limit,
            ),
            cost_estimate=cost,
        )(scale_arr, patches_p, w_p, b_p)

    # TODO(synk): if the consumer accepts NHWC, return the (N,OH,OW,Cout) slab
    # directly and skip this extra HBM transpose pass.
    return out[:M, :Cout].reshape(N, OH, OW, Cout).transpose(0, 3, 1, 2)  # NCHW


# ----------------------------- test --------------------------------------------

if __name__ == "__main__":
    # Module config: in_channels=4, out_channels=8, kernel_size=3, stride=1,
    # padding=1, dilation=1, groups=1, weight_bits=8, bias=True, signed=True.
    N, Cin, H, W = 2, 4, 16, 16
    Cout, KH, KW = 8, 3, 3
    stride, padding, dilation = (1, 1), (1, 1), (1, 1)
    weight_bits, signed = 8, True

    key = jax.random.PRNGKey(0)
    kx, kw = jax.random.split(key)

    x = jax.random.normal(kx, (N, Cin, H, W), dtype=jnp.float32)

    # kaiming_uniform_ (default args): bound = sqrt(6 / fan_in)
    fan_in = Cin * KH * KW
    bound = float(np.sqrt(6.0 / fan_in))
    weight = jax.random.uniform(kw, (Cout, Cin, KH, KW), jnp.float32, -bound, bound)
    bias = jnp.zeros((Cout,), jnp.float32)

    out = conv2d_quantization_forward(
        x, weight, bias,
        stride=stride, padding=padding, dilation=dilation,
        weight_bits=weight_bits, signed=signed,
    )
    out = jax.block_until_ready(out)

    # Reference: quantize weights in plain JAX (fp32) and run lax conv.
    qmax = 2 ** (weight_bits - 1) - 1
    qmin = -(2 ** (weight_bits - 1))
    s = jnp.max(jnp.abs(weight)) / qmax
    w_q = jnp.clip(jnp.round(weight / s), qmin, qmax) * s
    ref = lax.conv_general_dilated(
        x, w_q, window_strides=stride,
        padding=[(padding[0], padding[0]), (padding[1], padding[1])],
        rhs_dilation=dilation,
        dimension_numbers=("NCHW", "OIHW", "NCHW"),
    ) + bias[None, :, None, None]

    assert out.shape == (N, Cout, H, W), out.shape
    # Activations feed the MXU in bf16 (weight path is exact), so tolerance is
    # looser than a pure fp32 comparison would need.
    np.testing.assert_allclose(np.asarray(out), np.asarray(ref), rtol=5e-2, atol=5e-2)
    print("KERNEL_OK")
</pallas_src>

<mosaic_0001>
module attributes {stable_mosaic.version = 11 : i64} {
  func.func @_qconv_gemm_kernel(%arg0: i32, %arg1: memref<1xf32, #tpu.memory_space<smem>>, %arg2: memref<256x128xbf16, #tpu.memory_space<vmem>>, %arg3: memref<128x128xbf16, #tpu.memory_space<vmem>>, %arg4: memref<1x128xf32, #tpu.memory_space<vmem>>, %arg5: memref<256x128xf32, #tpu.memory_space<vmem>>) attributes {dimension_semantics = [#tpu.dimension_semantics<parallel>], iteration_bounds = array<i64: 2>, scalar_prefetch = 0 : i64, scratch_operands = 0 : i64, tpu.core_type = #tpu.core_type<tc>, window_params = [{transform_indices = @transform_0, window_bounds = array<i64: 1>}, {transform_indices = @transform_1, window_bounds = array<i64: 256, 128>}, {pipeline_mode = #tpu.pipeline_mode<synchronous>, transform_indices = @transform_2, window_bounds = array<i64: 128, 128>}, {pipeline_mode = #tpu.pipeline_mode<synchronous>, transform_indices = @transform_3, window_bounds = array<i64: 1, 128>}, {transform_indices = @transform_4, window_bounds = array<i64: 256, 128>}]} {
    %c0 = arith.constant 0 : index
    %c0_0 = arith.constant 0 : index
    %0 = vector.load %arg2[%c0, %c0_0] : memref<256x128xbf16, #tpu.memory_space<vmem>>, vector<256x128xbf16>
    %c0_1 = arith.constant 0 : index
    %c0_2 = arith.constant 0 : index
    %1 = vector.load %arg3[%c0_1, %c0_2] : memref<128x128xbf16, #tpu.memory_space<vmem>>, vector<128x128xbf16>
    %cst = arith.constant dense<0.000000e+00> : vector<256x128xf32>
    %2 = tpu.matmul %0, %1, %cst {dimension_numbers = #tpu.dot_dimension_numbers<[1], [0], [0], [1], [0, 0, 1, 1], [], []>} : vector<256x128xbf16>, vector<128x128xbf16>, vector<256x128xf32> -> vector<256x128xf32>
    %c0_3 = arith.constant 0 : index
    %3 = memref.load %arg1[%c0_3] : memref<1xf32, #tpu.memory_space<smem>>
    %4 = vector.broadcast %3 : f32 to vector<256x128xf32>
    %5 = arith.mulf %2, %4 : vector<256x128xf32>
    %c0_4 = arith.constant 0 : index
    %c0_5 = arith.constant 0 : index
    %6 = vector.load %arg4[%c0_4, %c0_5] : memref<1x128xf32, #tpu.memory_space<vmem>>, vector<1x128xf32>
    %7 = vector.broadcast %6 : vector<1x128xf32> to vector<256x128xf32>
    %8 = arith.addf %5, %7 : vector<256x128xf32>
    %c0_6 = arith.constant 0 : index
    %c0_7 = arith.constant 0 : index
    %9 = vector.load %arg5[%c0_6, %c0_7] : memref<256x128xf32, #tpu.memory_space<vmem>>, vector<256x128xf32>
    tpu.vector_store %arg5[%c0_6, %c0_7], %8 {strides = array<i32>} : memref<256x128xf32, #tpu.memory_space<vmem>>, vector<256x128xf32>,
    return
  }
  func.func @transform_0(%arg0: i32) -> i32 {
    %c0_i32 = arith.constant 0 : i32
    %c0_i32_0 = arith.constant 0 : i32
    return %c0_i32 : i32
  }
  func.func @transform_1(%arg0: i32) -> (i32, i32) {
    %c0_i32 = arith.constant 0 : i32
    %c0_i32_0 = arith.constant 0 : i32
    return %arg0, %c0_i32 : i32, i32
  }
  func.func @transform_2(%arg0: i32) -> (i32, i32) {
    %c0_i32 = arith.constant 0 : i32
    %c0_i32_0 = arith.constant 0 : i32
    %c0_i32_1 = arith.constant 0 : i32
    return %c0_i32, %c0_i32_0 : i32, i32
  }
  func.func @transform_3(%arg0: i32) -> (i32, i32) {
    %c0_i32 = arith.constant 0 : i32
    %c0_i32_0 = arith.constant 0 : i32
    %c0_i32_1 = arith.constant 0 : i32
    return %c0_i32, %c0_i32_0 : i32, i32
  }
  func.func @transform_4(%arg0: i32) -> (i32, i32) {
    %c0_i32 = arith.constant 0 : i32
    %c0_i32_0 = arith.constant 0 : i32
    return %arg0, %c0_i32 : i32, i32
  }
}

</mosaic_0001>

<llo_original>
// kernel: tpu_custom_call.1
$region0: #{tpu_custom_call.1}
  #allocation0 [shape = 'u32[]', space=smem, size = 0x4, offset = 0x4, fixed_abs, tag = 'smem constant byte address 0x4 - core index']
  #allocation1 [shape = 'u32[144,128]{1,0:T(1,128)}', space=vmem, size = 0x12000, scoped, tag = 'internal scratch']
  #allocation2 [shape = 'f32[1]{0:T(128)S(6)}', space=smem, size = 0x200, scoped, tag = 'scoped memory for tpu_custom_call.1']
  %s0 = inlined_call_operand.<no memory space> [shape: f32[1], index: 0, kind: input, shape index: {}]
  %s1 = inlined_call_operand.hbm [shape: bf16[512,128], index: 1, kind: input, shape index: {}]
  %s2 = inlined_call_operand.hbm [shape: bf16[128,128], index: 2, kind: input, shape index: {}]
  %s3 = inlined_call_operand.vmem [shape: f32[1,128], index: 3, kind: input, shape index: {}]
  %s4 = inlined_call_operand.hbm [shape: f32[512,128], index: 4, kind: output, shape index: {}]
  %s5 = sld [smem:[#allocation0]]
  $region57: #{tpu_custom_call.1} parent=0
    _
  %s7 = ssub.s32 1, %s5
  %s8 = scalar_select 0, %s7, %s5
  %9 = sst [smem:[#allocation2]] %s0
  $region1: #{tpu_custom_call.1} parent=0
    #allocation3 [shape = 'u8[131072]{0}', space=vmem, size = 0x20000, scoped, tag = 'input window, operand 1']
    #allocation4 [shape = 's32[2]{0}', space=sflag, size = 0x8, scoped, tag = 'scoped memory for tpu_custom_call.1']
    #allocation5 [shape = 's32[2]{0}', space=sflag, size = 0x8, scoped, tag = 'scoped memory for tpu_custom_call.1']
    #allocation6 [shape = 'u8[32768]{0}', space=vmem, size = 0x8000, scoped, tag = 'input window, operand 2, single buffered']
    #allocation7 [shape = 's32[1]{0}', space=sflag, size = 0x4, scoped, tag = 'scoped memory for tpu_custom_call.1']
    #allocation8 [shape = 'u8[262144]{0}', space=vmem, size = 0x40000, scoped, tag = 'output window, operand 0']
    %10 = vsyncpa [#allocation4], 0
    %s11 = scalar_lea.sflag [#allocation4], 1
    %12 = vsyncpa %s11, 0
    %13 = vsyncpa [#allocation7], 0
    %14 = vsyncpa [#allocation5], 0
    %s15 = scalar_lea.sflag [#allocation5], 1
    %16 = vsyncpa %s15, 0
    loop: start=0, step=1, limit=4
    $region2: #{tpu_custom_call.1} parent=1 // loop_pre_header
      _
    $region3: #{tpu_custom_call.1} parent=1 // loop_header
      %s18 = sphi 0, %s22
      %p19 = scmp.ge.s32.totalorder %s18, 4
      %s26 = sphi 0, %s26
      %s28 = sphi 0, %s26
      %s29 = sphi 0, %s28
      %s43 = sphi 0, %s29
      %s49 = sphi 0, %s51
      %s52 = sphi 0, %s49
      %s53 = sphi 0, %s52
      %s69 = sphi 0, %s53
      %s73 = sphi 0, %s73
      %s75 = sphi 0, %s73
      %s76 = sphi 0, %s75
      %s90 = sphi 0, %s76
      %s94 = sphi 0, %s94
      %s96 = sphi 0, %s94
      %s97 = sphi 0, %s96
      %s111 = sphi 0, %s97
      %s117 = sphi 0, %s119
      %s120 = sphi 0, %s117
      %s121 = sphi 0, %s120
      %s137 = sphi 0, %s121
    $region4: #{tpu_custom_call.1} parent=1 // loop_header_branch
      %21 = sbr.rel (%p19) target = $region8
    $region5: #{tpu_custom_call.1} parent=1 // loop_body
      %s23 = ssub.s32 %s18, 1
      %s24 = ssub.s32 %s18, 2
      %s25 = sadd.s32 %s18, 1
      %s27 = sadd.s32 %s26, 1
      %p30 = scmp.eq.s32.totalorder %s18, 1
      %p31 = scmp.ne.s32.totalorder %s26, %s28
      %p32 = scmp.eq.s32.totalorder %s18, 0
      %p33 = por %p31, %p32
      %p34 = scmp.ne.s32.totalorder %s26, %s28
      %p35 = scmp.eq.s32.totalorder %s23, 1
      %p36 = por %p34, %p35
      %p37 = scmp.ne.s32.totalorder %s28, %s29
      %p38 = scmp.eq.s32.totalorder %s23, 0
      %p39 = por %p37, %p38
      %p40 = scmp.ne.s32.totalorder %s28, %s29
      %p41 = scmp.eq.s32.totalorder %s24, 1
      %p42 = por %p40, %p41
      %p44 = scmp.ne.s32.totalorder %s29, %s43
      %p45 = scmp.eq.s32.totalorder %s24, 0
      %p46 = por %p44, %p45
      %s47 = ssub.s32 %s18, %s25
      %p48 = scmp.eq.s32.totalorder %s47, 0
      %s50 = sadd.s32 %s49, 1
      %s51 = scalar_select %p48, %s49, %s50
      %p54 = pneg %p48
      %p55 = scmp.eq.s32.totalorder %s18, 1
      %p56 = por %p54, %p55
      %p57 = scmp.ne.s32.totalorder %s49, %s52
      %p58 = scmp.eq.s32.totalorder %s18, 0
      %p59 = por %p57, %p58
      %p60 = scmp.ne.s32.totalorder %s49, %s52
      %p61 = scmp.eq.s32.totalorder %s23, 1
      %p62 = por %p60, %p61
      %p63 = scmp.ne.s32.totalorder %s52, %s53
      %p64 = scmp.eq.s32.totalorder %s23, 0
      %p65 = por %p63, %p64
      %p66 = scmp.ne.s32.totalorder %s52, %s53
      %p67 = scmp.eq.s32.totalorder %s24, 1
      %p68 = por %p66, %p67
      %p70 = scmp.ne.s32.totalorder %s53, %s69
      %p71 = scmp.eq.s32.totalorder %s24, 0
      %p72 = por %p70, %p71
      %s74 = sadd.s32 %s73, 1
      %p77 = scmp.eq.s32.totalorder %s18, 1
      %p78 = scmp.ne.s32.totalorder %s73, %s75
      %p79 = scmp.eq.s32.totalorder %s18, 0
      %p80 = por %p78, %p79
      %p81 = scmp.ne.s32.totalorder %s73, %s75
      %p82 = scmp.eq.s32.totalorder %s23, 1
      %p83 = por %p81, %p82
      %p84 = scmp.ne.s32.totalorder %s75, %s76
      %p85 = scmp.eq.s32.totalorder %s23, 0
      %p86 = por %p84, %p85
      %p87 = scmp.ne.s32.totalorder %s75, %s76
      %p88 = scmp.eq.s32.totalorder %s24, 1
      %p89 = por %p87, %p88
      %p91 = scmp.ne.s32.totalorder %s76, %s90
      %p92 = scmp.eq.s32.totalorder %s24, 0
      %p93 = por %p91, %p92
      %s95 = sadd.s32 %s94, 1
      %p98 = scmp.eq.s32.totalorder %s18, 1
      %p99 = scmp.ne.s32.totalorder %s94, %s96
      %p100 = scmp.eq.s32.totalorder %s18, 0
      %p101 = por %p99, %p100
      %p102 = scmp.ne.s32.totalorder %s94, %s96
      %p103 = scmp.eq.s32.totalorder %s23, 1
      %p104 = por %p102, %p103
      %p105 = scmp.ne.s32.totalorder %s96, %s97
      %p106 = scmp.eq.s32.totalorder %s23, 0
      %p107 = por %p105, %p106
      %p108 = scmp.ne.s32.totalorder %s96, %s97
      %p109 = scmp.eq.s32.totalorder %s24, 1
      %p110 = por %p108, %p109
      %p112 = scmp.ne.s32.totalorder %s97, %s111
      %p113 = scmp.eq.s32.totalorder %s24, 0
      %p114 = por %p112, %p113
      %s115 = ssub.s32 %s18, %s25
      %p116 = scmp.eq.s32.totalorder %s115, 0
      %s118 = sadd.s32 %s117, 1
      %s119 = scalar_select %p116, %s117, %s118
      %p122 = pneg %p116
      %p123 = scmp.eq.s32.totalorder %s18, 1
      %p124 = por %p122, %p123
      %p125 = scmp.ne.s32.totalorder %s117, %s120
      %p126 = scmp.eq.s32.totalorder %s18, 0
      %p127 = por %p125, %p126
      %p128 = scmp.ne.s32.totalorder %s117, %s120
      %p129 = scmp.eq.s32.totalorder %s23, 1
      %p130 = por %p128, %p129
      %p131 = scmp.ne.s32.totalorder %s120, %s121
      %p132 = scmp.eq.s32.totalorder %s23, 0
      %p133 = por %p131, %p132
      %p134 = scmp.ne.s32.totalorder %s120, %s121
      %p135 = scmp.eq.s32.totalorder %s24, 1
      %p136 = por %p134, %p135
      %p138 = scmp.ne.s32.totalorder %s121, %s137
      %p139 = scmp.eq.s32.totalorder %s24, 0
      %p140 = por %p138, %p139
      %p141 = scmp.le.s32.totalorder 1, %s18
      %p142 = scmp.lt.s32.totalorder %s18, 3
      %p143 = pnand %p141, %p142
      %p144 = pneg %p143
      // Predicated region
      $region9: #{tpu_custom_call.1} parent=5 // pred_check
        _
      $region10: #{tpu_custom_call.1} parent=5 // pred_check_branch
        %146 = sbr.rel (%p143) target = $region12
      $region11: #{tpu_custom_call.1} parent=5 // pred_region
        %s147 = ssub.s32 %s18, 1
        // Predicated region
        $region13: #{tpu_custom_call.1} parent=11 // pred_check
          %p148 = pneg %p39
        $region14: #{tpu_custom_call.1} parent=11 // pred_check_branch
          %150 = sbr.rel (%p148) target = $region16
        $region15: #{tpu_custom_call.1} parent=11 // pred_region
          _
        $region16: #{tpu_custom_call.1} parent=11 // pred_fallthru
          _
        // Predicated region
        $region17: #{tpu_custom_call.1} parent=11 // pred_check
          %p151 = pneg %p86
        $region18: #{tpu_custom_call.1} parent=11 // pred_check_branch
          %153 = sbr.rel (%p151) target = $region20
        $region19: #{tpu_custom_call.1} parent=11 // pred_region
          %s155 = ssub.s32 1024, 1024
          %156 = vsyncadd [#allocation7], %s155
          %s157 = sshll.u32 [#allocation6], 4
          %s158 = int_to_ptr.vmem [resolvable:$true] %s157
          %163 = dma.hbm_to_vmem [thread:$0]  %s2, 1024, %s158, [#allocation7], 64, 64, 4
        $region20: #{tpu_custom_call.1} parent=11 // pred_fallthru
          _
        // Predicated region
        $region21: #{tpu_custom_call.1} parent=11 // pred_check
          %p164 = pneg %p107
        $region22: #{tpu_custom_call.1} parent=11 // pred_check_branch
          %166 = sbr.rel (%p164) target = $region24
        $region23: #{tpu_custom_call.1} parent=11 // pred_region
          _
        $region24: #{tpu_custom_call.1} parent=11 // pred_fallthru
          _
      $region12: #{tpu_custom_call.1} parent=5 // pred_fallthru
        _
      %p167 = scmp.lt.s32.totalorder %s18, 2
      // Predicated region
      $region25: #{tpu_custom_call.1} parent=5 // pred_check
        %p168 = pneg %p167
      $region26: #{tpu_custom_call.1} parent=5 // pred_check_branch
        %170 = sbr.rel (%p168) target = $region28
      $region27: #{tpu_custom_call.1} parent=5 // pred_region
        // Predicated region
        $region29: #{tpu_custom_call.1} parent=27 // pred_check
          %p171 = pneg %p59
        $region30: #{tpu_custom_call.1} parent=27 // pred_check_branch
          %173 = sbr.rel (%p171) target = $region32
        $region31: #{tpu_custom_call.1} parent=27 // pred_region
          %s174 = sand.u32 %s49, 1
          %s175 = scalar_lea.sflag [#allocation4], %s174
          %s176 = sand.u32 %s49, 1
          %s177 = smul.addr %s176, 128
          %s178 = scalar_lea.vmem [#allocation3], %s177
          %s179 = smul.u32 32, %s18
          %s181 = ssub.s32 2048, 2048
          %182 = vsyncadd %s175, %s181
          %s183 = smul.addr %s179, 64
          %s184 = scalar_lea.hbm %s1, %s183
          %s185 = sshll.u32 %s178, 4
          %s186 = int_to_ptr.vmem [resolvable:$true] %s185
          %191 = dma.hbm_to_vmem [thread:$0]  %s184, 2048, %s186, %s175, 64, 64, 4
        $region32: #{tpu_custom_call.1} parent=27 // pred_fallthru
          _
      $region28: #{tpu_custom_call.1} parent=5 // pred_fallthru
        _
      %p192 = scmp.le.s32.totalorder 1, %s18
      %p193 = scmp.lt.s32.totalorder %s18, 3
      %p194 = pnand %p192, %p193
      %p195 = pneg %p194
      // Predicated region
      $region33: #{tpu_custom_call.1} parent=5 // pred_check
        _
      $region34: #{tpu_custom_call.1} parent=5 // pred_check_branch
        %197 = sbr.rel (%p194) target = $region36
      $region35: #{tpu_custom_call.1} parent=5 // pred_region
        %s198 = ssub.s32 %s18, 1
        %s199 = sand.u32 %s52, 1
        %s200 = scalar_lea.sflag [#allocation4], %s199
        %s201 = sand.u32 %s52, 1
        %s202 = smul.addr %s201, 128
        %s203 = scalar_lea.vmem [#allocation3], %s202
        // Predicated region
        $region37: #{tpu_custom_call.1} parent=35 // pred_check
          %p204 = pneg %p65
        $region38: #{tpu_custom_call.1} parent=35 // pred_check_branch
          %206 = sbr.rel (%p204) target = $region40
        $region39: #{tpu_custom_call.1} parent=35 // pred_region
          %207 = dma.done %s200, 2048
        $region40: #{tpu_custom_call.1} parent=35 // pred_fallthru
          _
        // Predicated region
        $region41: #{tpu_custom_call.1} parent=35 // pred_check
          %p208 = pneg %p86
        $region42: #{tpu_custom_call.1} parent=35 // pred_check_branch
          %210 = sbr.rel (%p208) target = $region44
        $region43: #{tpu_custom_call.1} parent=35 // pred_region
          %211 = dma.done [#allocation7], 1024
        $region44: #{tpu_custom_call.1} parent=35 // pred_fallthru
          _
        %p212 = pneg %p39
        %p213 = pneg %p36
        %s214 = sand.u32 %s52, 1
        %s215 = scalar_lea.sflag [#allocation4], %s214
        %s216 = sand.u32 %s52, 1
        %s217 = smul.addr %s216, 128
        %s218 = scalar_lea.vmem [#allocation3], %s217
        %p219 = pneg %p65
        %p220 = pneg %p62
        %p221 = pneg %p86
        %p222 = pneg %p83
        %p223 = pneg %p107
        %p224 = pneg %p104
        %p225 = pneg %p133
        %p226 = pneg %p130
        %s227 = sand.u32 %s120, 1
        %s228 = scalar_lea.sflag [#allocation5], %s227
        %s229 = sand.u32 %s120, 1
        %s230 = smul.addr %s229, 256
        %s231 = scalar_lea.vmem [#allocation8], %s230
        %s232 = smul.u32 32, %s23
        %s233 = smul.u32 32, %s23
        %v235 = vld [vmem:[%s203] sm:$0xf]
        %v236 = vld [vmem:[%s203 + $0x4] sm:$0xf]
        %v237 = vld [vmem:[%s203 + $0x8] sm:$0xf]
        %v238 = vld [vmem:[%s203 + $0xc] sm:$0xf]
        %v239 = vld [vmem:[%s203 + $0x10] sm:$0xf]
        %v240 = vld [vmem:[%s203 + $0x14] sm:$0xf]
        %v241 = vld [vmem:[%s203 + $0x18] sm:$0xf]
        %v242 = vld [vmem:[%s203 + $0x1c] sm:$0xf]
        %v243 = vld [vmem:[%s203 + $0x20] sm:$0xf]
        %v244 = vld [vmem:[%s203 + $0x24] sm:$0xf]
        %v245 = vld [vmem:[%s203 + $0x28] sm:$0xf]
        %v246 = vld [vmem:[%s203 + $0x2c] sm:$0xf]
        %v247 = vld [vmem:[%s203 + $0x30] sm:$0xf]
        %v248 = vld [vmem:[%s203 + $0x34] sm:$0xf]
        %v249 = vld [vmem:[%s203 + $0x38] sm:$0xf]
        %v250 = vld [vmem:[%s203 + $0x3c] sm:$0xf]
        %v251 = vld [vmem:[%s203 + $0x40] sm:$0xf]
        %v252 = vld [vmem:[%s203 + $0x44] sm:$0xf]
        %v253 = vld [vmem:[%s203 + $0x48] sm:$0xf]
        %v254 = vld [vmem:[%s203 + $0x4c] sm:$0xf]
        %v255 = vld [vmem:[%s203 + $0x50] sm:$0xf]
        %v256 = vld [vmem:[%s203 + $0x54] sm:$0xf]
        %v257 = vld [vmem:[%s203 + $0x58] sm:$0xf]
        %v258 = vld [vmem:[%s203 + $0x5c] sm:$0xf]
        %v259 = vld [vmem:[%s203 + $0x60] sm:$0xf]
        %v260 = vld [vmem:[%s203 + $0x64] sm:$0xf]
        %v261 = vld [vmem:[%s203 + $0x68] sm:$0xf]
        %v262 = vld [vmem:[%s203 + $0x6c] sm:$0xf]
        %v263 = vld [vmem:[%s203 + $0x70] sm:$0xf]
        %v264 = vld [vmem:[%s203 + $0x74] sm:$0xf]
        %v265 = vld [vmem:[%s203 + $0x78] sm:$0xf]
        %v266 = vld [vmem:[%s203 + $0x7c] sm:$0xf]
        %v267 = vld [vmem:[#allocation6] sm:$0xf]
        %v268 = vld [vmem:[#allocation6 + $0x4] sm:$0xf]
        %v269 = vld [vmem:[#allocation6 + $0x8] sm:$0xf]
        %v270 = vld [vmem:[#allocation6 + $0xc] sm:$0xf]
        %v271 = vld [vmem:[#allocation6 + $0x10] sm:$0xf]
        %v272 = vld [vmem:[#allocation6 + $0x14] sm:$0xf]
        %v273 = vld [vmem:[#allocation6 + $0x18] sm:$0xf]
        %v274 = vld [vmem:[#allocation6 + $0x1c] sm:$0xf]
        %v275 = vld [vmem:[#allocation6 + $0x20] sm:$0xf]
        %v276 = vld [vmem:[#allocation6 + $0x24] sm:$0xf]
        %v277 = vld [vmem:[#allocation6 + $0x28] sm:$0xf]
        %v278 = vld [vmem:[#allocation6 + $0x2c] sm:$0xf]
        %v279 = vld [vmem:[#allocation6 + $0x30] sm:$0xf]
        %v280 = vld [vmem:[#allocation6 + $0x34] sm:$0xf]
        %v281 = vld [vmem:[#allocation6 + $0x38] sm:$0xf]
        %v282 = vld [vmem:[#allocation6 + $0x3c] sm:$0xf]
        %v315 = vunpack.c.l.b16 %v235
        %v316 = vunpack.c.l.b16 %v236
        %v317 = vunpack.c.l.b16 %v237
        %v318 = vunpack.c.l.b16 %v238
        %v319 = vunpack.c.l.b16 %v239
        %v320 = vunpack.c.l.b16 %v240
        %v321 = vunpack.c.l.b16 %v241
        %v322 = vunpack.c.l.b16 %v242
        %v323 = vunpack.c.l.b16 %v243
        %v324 = vunpack.c.l.b16 %v244
        %v325 = vunpack.c.l.b16 %v245
        %v326 = vunpack.c.l.b16 %v246
        %v327 = vunpack.c.l.b16 %v247
        %v328 = vunpack.c.l.b16 %v248
        %v329 = vunpack.c.l.b16 %v249
        %v330 = vunpack.c.l.b16 %v250
        %v331 = vunpack.c.l.b16 %v251
        %v332 = vunpack.c.l.b16 %v252
        %v333 = vunpack.c.l.b16 %v253
        %v334 = vunpack.c.l.b16 %v254
        %v335 = vunpack.c.l.b16 %v255
        %v336 = vunpack.c.l.b16 %v256
        %v337 = vunpack.c.l.b16 %v257
        %v338 = vunpack.c.l.b16 %v258
        %v339 = vunpack.c.l.b16 %v259
        %v340 = vunpack.c.l.b16 %v260
        %v341 = vunpack.c.l.b16 %v261
        %v342 = vunpack.c.l.b16 %v262
        %v343 = vunpack.c.l.b16 %v263
        %v344 = vunpack.c.l.b16 %v264
        %v345 = vunpack.c.l.b16 %v265
        %v346 = vunpack.c.l.b16 %v266
        %v347 = vpack.c.b16 %v316, %v315
        %v348 = vpack.c.b16 %v318, %v317
        %v349 = vpack.c.b16 %v320, %v319
        %v350 = vpack.c.b16 %v322, %v321
        %v351 = vpack.c.b16 %v324, %v323
        %v352 = vpack.c.b16 %v326, %v325
        %v353 = vpack.c.b16 %v328, %v327
        %v354 = vpack.c.b16 %v330, %v329
        %v355 = vpack.c.b16 %v332, %v331
        %v356 = vpack.c.b16 %v334, %v333
        %v357 = vpack.c.b16 %v336, %v335
        %v358 = vpack.c.b16 %v338, %v337
        %v359 = vpack.c.b16 %v340, %v339
        %v360 = vpack.c.b16 %v342, %v341
        %v361 = vpack.c.b16 %v344, %v343
        %v362 = vpack.c.b16 %v346, %v345
        %v395 = vunpack.c.l.b16 %v267
        %v396 = vunpack.c.l.b16 %v268
        %v397 = vunpack.c.l.b16 %v269
        %v398 = vunpack.c.l.b16 %v270
        %v399 = vunpack.c.l.b16 %v271
        %v400 = vunpack.c.l.b16 %v272
        %v401 = vunpack.c.l.b16 %v273
        %v402 = vunpack.c.l.b16 %v274
        %v403 = vunpack.c.l.b16 %v275
        %v404 = vunpack.c.l.b16 %v276
        %v405 = vunpack.c.l.b16 %v277
        %v406 = vunpack.c.l.b16 %v278
        %v407 = vunpack.c.l.b16 %v279
        %v408 = vunpack.c.l.b16 %v280
        %v409 = vunpack.c.l.b16 %v281
        %v410 = vunpack.c.l.b16 %v282
        %v411 = vpack.c.b16 %v396, %v395
        %v412 = vpack.c.b16 %v398, %v397
        %v413 = vpack.c.b16 %v400, %v399
        %v414 = vpack.c.b16 %v402, %v401
        %v415 = vpack.c.b16 %v404, %v403
        %v416 = vpack.c.b16 %v406, %v405
        %v417 = vpack.c.b16 %v408, %v407
        %v418 = vpack.c.b16 %v410, %v409
        %427 = vmatprep.subr.bf16.mxu0 0
        %428 = vmatpush1.bf16.msra.mxu0 %v411
        %429 = vmatprep.subr.bf16.mxu0 0
        %430 = vmatpush1.bf16.msra.mxu0 %v412
        %431 = vmatprep.subr.bf16.mxu0 0
        %432 = vmatpush1.bf16.msra.mxu0 %v413
        %433 = vmatprep.subr.bf16.mxu0 0
        %434 = vmatpush1.bf16.msra.mxu0 %v414
        %435 = vmatprep.subr.bf16.mxu0 0
        %436 = vmatpush1.bf16.msra.mxu0 %v415
        %437 = vmatprep.subr.bf16.mxu0 0
        %438 = vmatpush1.bf16.msra.mxu0 %v416
        %439 = vmatprep.subr.bf16.mxu0 0
        %440 = vmatpush1.bf16.msra.mxu0 %v417
        %441 = vmatprep.subr.bf16.mxu0 0
        %442 = vmatpush1.bf16.msra.mxu0 %v418
        %443 = vmatprep.subr.bf16.mxu0 0
        %444 = vmatpush1.bf16.msra.mxu0 0
        %445 = vmatprep.subr.bf16.mxu0 0
        %446 = vmatpush1.bf16.msra.mxu0 0
        %447 = vmatprep.subr.bf16.mxu0 0
        %448 = vmatpush1.bf16.msra.mxu0 0
        %449 = vmatprep.subr.bf16.mxu0 0
        %450 = vmatpush1.bf16.msra.mxu0 0
        %451 = vmatprep.subr.bf16.mxu0 0
        %452 = vmatpush1.bf16.msra.mxu0 0
        %453 = vmatprep.subr.bf16.mxu0 0
        %454 = vmatpush1.bf16.msra.mxu0 0
        %455 = vmatprep.subr.bf16.mxu0 0
        %456 = vmatpush1.bf16.msra.mxu0 0
        %457 = vmatprep.subr.bf16.mxu0 0
        %458 = vmatpush1.bf16.msra.mxu0 0
        %459 = vmatprep.mubr.bf16.mxu0 0
        %460 = vmatmul.mubr.bf16.gmra.mrb[0].mxu0 %v347
        %v461 = vpop.f32.mrb[0].mxu0
        %v462 = vadd.f32 0.0, %v461
        %v463 = vpop.f32.mrb[0].mxu0
        %v464 = vpop.f32.mrb[0].mxu0
        %v465 = vadd.f32 0.0, %v464
        %v466 = vpop.f32.mrb[0].mxu0
        %467 = vmatprep.mubr.bf16.mxu0 0
        %468 = vmatmul.mubr.bf16.gmra.mrb[0].mxu0 %v348
        %v469 = vpop.f32.mrb[0].mxu0
        %v470 = vadd.f32 0.0, %v469
        %v471 = vpop.f32.mrb[0].mxu0
        %v472 = vpop.f32.mrb[0].mxu0
        %v473 = vadd.f32 0.0, %v472
        %v474 = vpop.f32.mrb[0].mxu0
        %475 = vmatprep.mubr.bf16.mxu0 0
        %476 = vmatmul.mubr.bf16.gmra.mrb[0].mxu0 %v349
        %v477 = vpop.f32.mrb[0].mxu0
        %v478 = vadd.f32 0.0, %v477
        %v479 = vpop.f32.mrb[0].mxu0
        %v480 = vpop.f32.mrb[0].mxu0
        %v481 = vadd.f32 0.0, %v480
        %v482 = vpop.f32.mrb[0].mxu0
        %483 = vmatprep.mubr.bf16.mxu0 0
        %484 = vmatmul.mubr.bf16.gmra.mrb[0].mxu0 %v350
        %v485 = vpop.f32.mrb[0].mxu0
        %v486 = vadd.f32 0.0, %v485
        %v487 = vpop.f32.mrb[0].mxu0
        %v488 = vpop.f32.mrb[0].mxu0
        %v489 = vadd.f32 0.0, %v488
        %v490 = vpop.f32.mrb[0].mxu0
        %491 = vmatprep.mubr.bf16.mxu0 0
        %492 = vmatmul.mubr.bf16.gmra.mrb[0].mxu0 %v351
        %v493 = vpop.f32.mrb[0].mxu0
        %v494 = vadd.f32 0.0, %v493
        %v495 = vpop.f32.mrb[0].mxu0
        %v496 = vpop.f32.mrb[0].mxu0
        %v497 = vadd.f32 0.0, %v496
        %v498 = vpop.f32.mrb[0].mxu0
        %499 = vmatprep.mubr.bf16.mxu0 0
        %500 = vmatmul.mubr.bf16.gmra.mrb[0].mxu0 %v352
        %v501 = vpop.f32.mrb[0].mxu0
        %v502 = vadd.f32 0.0, %v501
        %v503 = vpop.f32.mrb[0].mxu0
        %v504 = vpop.f32.mrb[0].mxu0
        %v505 = vadd.f32 0.0, %v504
        %v506 = vpop.f32.mrb[0].mxu0
        %507 = vmatprep.mubr.bf16.mxu0 0
        %508 = vmatmul.mubr.bf16.gmra.mrb[0].mxu0 %v353
        %v509 = vpop.f32.mrb[0].mxu0
        %v510 = vadd.f32 0.0, %v509
        %v511 = vpop.f32.mrb[0].mxu0
        %v512 = vpop.f32.mrb[0].mxu0
        %v513 = vadd.f32 0.0, %v512
        %v514 = vpop.f32.mrb[0].mxu0
        %515 = vmatprep.mubr.bf16.mxu0 0
        %516 = vmatmul.mubr.bf16.gmra.mrb[0].mxu0 %v354
        %v517 = vpop.f32.mrb[0].mxu0
        %v518 = vadd.f32 0.0, %v517
        %v519 = vpop.f32.mrb[0].mxu0
        %v520 = vpop.f32.mrb[0].mxu0
        %v521 = vadd.f32 0.0, %v520
        %v522 = vpop.f32.mrb[0].mxu0
        %523 = vmatprep.mubr.bf16.mxu0 0
        %524 = vmatmul.mubr.bf16.gmra.mrb[0].mxu0 %v355
        %v525 = vpop.f32.mrb[0].mxu0
        %v526 = vadd.f32 0.0, %v525
        %v527 = vpop.f32.mrb[0].mxu0
        %v528 = vpop.f32.mrb[0].mxu0
        %v529 = vadd.f32 0.0, %v528
        %v530 = vpop.f32.mrb[0].mxu0
        %531 = vmatprep.mubr.bf16.mxu0 0
        %532 = vmatmul.mubr.bf16.gmra.mrb[0].mxu0 %v356
        %v533 = vpop.f32.mrb[0].mxu0
        %v534 = vadd.f32 0.0, %v533
        %v535 = vpop.f32.mrb[0].mxu0
        %v536 = vpop.f32.mrb[0].mxu0
        %v537 = vadd.f32 0.0, %v536
        %v538 = vpop.f32.mrb[0].mxu0
        %539 = vmatprep.mubr.bf16.mxu0 0
        %540 = vmatmul.mubr.bf16.gmra.mrb[0].mxu0 %v357
        %v541 = vpop.f32.mrb[0].mxu0
        %v542 = vadd.f32 0.0, %v541
        %v543 = vpop.f32.mrb[0].mxu0
        %v544 = vpop.f32.mrb[0].mxu0
        %v545 = vadd.f32 0.0, %v544
        %v546 = vpop.f32.mrb[0].mxu0
        %547 = vmatprep.mubr.bf16.mxu0 0
        %548 = vmatmul.mubr.bf16.gmra.mrb[0].mxu0 %v358
        %v549 = vpop.f32.mrb[0].mxu0
        %v550 = vadd.f32 0.0, %v549
        %v551 = vpop.f32.mrb[0].mxu0
        %v552 = vpop.f32.mrb[0].mxu0
        %v553 = vadd.f32 0.0, %v552
        %v554 = vpop.f32.mrb[0].mxu0
        %555 = vmatprep.mubr.bf16.mxu0 0
        %556 = vmatmul.mubr.bf16.gmra.mrb[0].mxu0 %v359
        %v557 = vpop.f32.mrb[0].mxu0
        %v558 = vadd.f32 0.0, %v557
        %v559 = vpop.f32.mrb[0].mxu0
        %v560 = vpop.f32.mrb[0].mxu0
        %v561 = vadd.f32 0.0, %v560
        %v562 = vpop.f32.mrb[0].mxu0
        %563 = vmatprep.mubr.bf16.mxu0 0
        %564 = vmatmul.mubr.bf16.gmra.mrb[0].mxu0 %v360
        %v565 = vpop.f32.mrb[0].mxu0
        %v566 = vadd.f32 0.0, %v565
        %v567 = vpop.f32.mrb[0].mxu0
        %v568 = vpop.f32.mrb[0].mxu0
        %v569 = vadd.f32 0.0, %v568
        %v570 = vpop.f32.mrb[0].mxu0
        %571 = vmatprep.mubr.bf16.mxu0 0
        %572 = vmatmul.mubr.bf16.gmra.mrb[0].mxu0 %v361
        %v573 = vpop.f32.mrb[0].mxu0
        %v574 = vadd.f32 0.0, %v573
        %v575 = vpop.f32.mrb[0].mxu0
        %v576 = vpop.f32.mrb[0].mxu0
        %v577 = vadd.f32 0.0, %v576
        %v578 = vpop.f32.mrb[0].mxu0
        %579 = vmatprep.mubr.bf16.mxu0 0
        %580 = vmatmul.mubr.bf16.gmra.mrb[0].mxu0 %v362
        %v581 = vpop.f32.mrb[0].mxu0
        %v582 = vadd.f32 0.0, %v581
        %v583 = vpop.f32.mrb[0].mxu0
        %v584 = vpop.f32.mrb[0].mxu0
        %v585 = vadd.f32 0.0, %v584
        %v586 = vpop.f32.mrb[0].mxu0
        %587 = vdwg.mxu0
        %s588 = sld [smem:[#allocation2]]
        %v589 = vstv %s588
        %v590 = vmul.f32 %v462, %v589
        %v591 = vmul.f32 %v465, %v589
        %v592 = vmul.f32 %v470, %v589
        %v593 = vmul.f32 %v473, %v589
        %v594 = vmul.f32 %v478, %v589
        %v595 = vmul.f32 %v481, %v589
        %v596 = vmul.f32 %v486, %v589
        %v597 = vmul.f32 %v489, %v589
        %v598 = vmul.f32 %v494, %v589
        %v599 = vmul.f32 %v497, %v589
        %v600 = vmul.f32 %v502, %v589
        %v601 = vmul.f32 %v505, %v589
        %v602 = vmul.f32 %v510, %v589
        %v603 = vmul.f32 %v513, %v589
        %v604 = vmul.f32 %v518, %v589
        %v605 = vmul.f32 %v521, %v589
        %v606 = vmul.f32 %v526, %v589
        %v607 = vmul.f32 %v529, %v589
        %v608 = vmul.f32 %v534, %v589
        %v609 = vmul.f32 %v537, %v589
        %v610 = vmul.f32 %v542, %v589
        %v611 = vmul.f32 %v545, %v589
        %v612 = vmul.f32 %v550, %v589
        %v613 = vmul.f32 %v553, %v589
        %v614 = vmul.f32 %v558, %v589
        %v615 = vmul.f32 %v561, %v589
        %v616 = vmul.f32 %v566, %v589
        %v617 = vmul.f32 %v569, %v589
        %v618 = vmul.f32 %v574, %v589
        %v619 = vmul.f32 %v577, %v589
        %v620 = vmul.f32 %v582, %v589
        %v621 = vmul.f32 %v585, %v589
        %v622 = vld [vmem:[%s3] sm:$0x1]
        %v624 = vlaneseq
        %v625 = vshrl.u32 %v624, 7
        %v626 = vsub.s32 0, %v625
        %v627 = vrot.slane %v622, %v626
        %v629 = vadd.f32 %v590, %v627
        %v630 = vadd.f32 %v591, %v627
        %v631 = vadd.f32 %v592, %v627
        %v632 = vadd.f32 %v593, %v627
        %v633 = vadd.f32 %v594, %v627
        %v634 = vadd.f32 %v595, %v627
        %v635 = vadd.f32 %v596, %v627
        %v636 = vadd.f32 %v597, %v627
        %v637 = vadd.f32 %v598, %v627
        %v638 = vadd.f32 %v599, %v627
        %v639 = vadd.f32 %v600, %v627
        %v640 = vadd.f32 %v601, %v627
        %v641 = vadd.f32 %v602, %v627
        %v642 = vadd.f32 %v603, %v627
        %v643 = vadd.f32 %v604, %v627
        %v644 = vadd.f32 %v605, %v627
        %v645 = vadd.f32 %v606, %v627
        %v646 = vadd.f32 %v607, %v627
        %v647 = vadd.f32 %v608, %v627
        %v648 = vadd.f32 %v609, %v627
        %v649 = vadd.f32 %v610, %v627
        %v650 = vadd.f32 %v611, %v627
        %v651 = vadd.f32 %v612, %v627
        %v652 = vadd.f32 %v613, %v627
        %v653 = vadd.f32 %v614, %v627
        %v654 = vadd.f32 %v615, %v627
        %v655 = vadd.f32 %v616, %v627
        %v656 = vadd.f32 %v617, %v627
        %v657 = vadd.f32 %v618, %v627
        %v658 = vadd.f32 %v619, %v627
        %v659 = vadd.f32 %v620, %v627
        %v660 = vadd.f32 %v621, %v627
        %661 = vst [vmem:[%s231] sm:$0xff] %v629
        %662 = vst [vmem:[%s231 + $0x8] sm:$0xff] %v630
        %663 = vst [vmem:[%s231 + $0x10] sm:$0xff] %v631
        %664 = vst [vmem:[%s231 + $0x18] sm:$0xff] %v632
        %665 = vst [vmem:[%s231 + $0x20] sm:$0xff] %v633
        %666 = vst [vmem:[%s231 + $0x28] sm:$0xff] %v634
        %667 = vst [vmem:[%s231 + $0x30] sm:$0xff] %v635
        %668 = vst [vmem:[%s231 + $0x38] sm:$0xff] %v636
        %669 = vst [vmem:[%s231 + $0x40] sm:$0xff] %v637
        %670 = vst [vmem:[%s231 + $0x48] sm:$0xff] %v638
        %671 = vst [vmem:[%s231 + $0x50] sm:$0xff] %v639
        %672 = vst [vmem:[%s231 + $0x58] sm:$0xff] %v640
        %673 = vst [vmem:[%s231 + $0x60] sm:$0xff] %v641
        %674 = vst [vmem:[%s231 + $0x68] sm:$0xff] %v642
        %675 = vst [vmem:[%s231 + $0x70] sm:$0xff] %v643
        %676 = vst [vmem:[%s231 + $0x78] sm:$0xff] %v644
        %677 = vst [vmem:[%s231 + $0x80] sm:$0xff] %v645
        %678 = vst [vmem:[%s231 + $0x88] sm:$0xff] %v646
        %679 = vst [vmem:[%s231 + $0x90] sm:$0xff] %v647
        %680 = vst [vmem:[%s231 + $0x98] sm:$0xff] %v648
        %681 = vst [vmem:[%s231 + $0xa0] sm:$0xff] %v649
        %682 = vst [vmem:[%s231 + $0xa8] sm:$0xff] %v650
        %683 = vst [vmem:[%s231 + $0xb0] sm:$0xff] %v651
        %684 = vst [vmem:[%s231 + $0xb8] sm:$0xff] %v652
        %685 = vst [vmem:[%s231 + $0xc0] sm:$0xff] %v653
        %686 = vst [vmem:[%s231 + $0xc8] sm:$0xff] %v654
        %687 = vst [vmem:[%s231 + $0xd0] sm:$0xff] %v655
        %688 = vst [vmem:[%s231 + $0xd8] sm:$0xff] %v656
        %689 = vst [vmem:[%s231 + $0xe0] sm:$0xff] %v657
        %690 = vst [vmem:[%s231 + $0xe8] sm:$0xff] %v658
        %691 = vst [vmem:[%s231 + $0xf0] sm:$0xff] %v659
        %692 = vst [vmem:[%s231 + $0xf8] sm:$0xff] %v660
        %s693 = sand.u32 %s120, 1
        %s694 = scalar_lea.sflag [#allocation5], %s693
        %s695 = sand.u32 %s120, 1
        %s696 = smul.addr %s695, 256
        %s697 = scalar_lea.vmem [#allocation8], %s696
        // Predicated region
        $region45: #{tpu_custom_call.1} parent=35 // pred_check
          %p698 = pneg %p130
        $region46: #{tpu_custom_call.1} parent=35 // pred_check_branch
          %700 = sbr.rel (%p698) target = $region48
        $region47: #{tpu_custom_call.1} parent=35 // pred_region
          %s701 = smul.u32 32, %s23
          %s703 = ssub.s32 4096, 4096
          %704 = vsyncadd %s694, %s703
          %s705 = smul.addr %s701, 128
          %s706 = scalar_lea.hbm %s4, %s705
          %s707 = sshll.u32 %s697, 4
          %s708 = int_to_ptr.vmem [resolvable:$true] %s707
          %713 = dma.vmem_to_hbm [thread:$0]  %s708, 4096, %s706, %s694, 128, 128, 8
        $region48: #{tpu_custom_call.1} parent=35 // pred_fallthru
          _
      $region36: #{tpu_custom_call.1} parent=5 // pred_fallthru
        _
      %p714 = scmp.le.s32.totalorder 2, %s18
      // Predicated region
      $region49: #{tpu_custom_call.1} parent=5 // pred_check
        %p715 = pneg %p714
      $region50: #{tpu_custom_call.1} parent=5 // pred_check_branch
        %717 = sbr.rel (%p715) target = $region52
      $region51: #{tpu_custom_call.1} parent=5 // pred_region
        %s718 = ssub.s32 %s18, 2
        // Predicated region
        $region53: #{tpu_custom_call.1} parent=51 // pred_check
          %p719 = pneg %p136
        $region54: #{tpu_custom_call.1} parent=51 // pred_check_branch
          %721 = sbr.rel (%p719) target = $region56
        $region55: #{tpu_custom_call.1} parent=51 // pred_region
          %s722 = sand.u32 %s121, 1
          %s723 = scalar_lea.sflag [#allocation5], %s722
          %s724 = sand.u32 %s121, 1
          %s725 = smul.addr %s724, 256
          %s726 = scalar_lea.vmem [#allocation8], %s725
          %727 = dma.done %s723, 4096
        $region56: #{tpu_custom_call.1} parent=51 // pred_fallthru
          _
      $region52: #{tpu_custom_call.1} parent=5 // pred_fallthru
        _
    $region6: #{tpu_custom_call.1} parent=1 // loop_footer
      %s22 = sadd.s32 1, %s18
    $region7: #{tpu_custom_call.1} parent=1 // loop_footer_branch
      %17 = sbr.rel target = $region3
    $region8: #{tpu_custom_call.1} parent=1 // loop_exit
      _
    %728 = vsyncpa [#allocation4], 1
    %s729 = scalar_lea.sflag [#allocation4], 1
    %730 = vsyncpa %s729, 1
    %731 = vsyncpa [#allocation7], 1
    %732 = vsyncpa [#allocation5], 1
    %s733 = scalar_lea.sflag [#allocation5], 1
    %734 = vsyncpa %s733, 1

</llo_original>
